<compile_context>
chip_gen: v7x
topology: tpu7x:2x2x1
jax: 0.10.0
libtpu: 0.0.40
codegen_flags: <defaults>
</compile_context>

<pallas_src>
import jax
import jax.numpy as jnp
from jax.experimental import pallas as pl
from jax.experimental.pallas import tpu as pltpu


# ----------------------------- irreps helpers --------------------------------


def _round_up(x: int, m: int) -> int:
    return ((x + m - 1) // m) * m


def _irreps_dim(irreps) -> int:
    # irreps: list of (mul, (l, parity))
    return sum(mul * (2 * l + 1) for mul, (l, _p) in irreps)


def _irreps_offsets(irreps):
    offs = [0]
    for mul, (l, _p) in irreps:
        offs.append(offs[-1] + mul * (2 * l + 1))
    return offs


def _make_o3_linear_dense_weight(key, irreps_in, irreps_out, dtype=jnp.float32):
    """Dense [dim_in, dim_out] matrix equivalent to e3nn o3.Linear with internal
    N(0,1) weights and default 'element' path normalization (no biases)."""
    d_in = _irreps_dim(irreps_in)
    d_out = _irreps_dim(irreps_out)
    in_off = _irreps_offsets(irreps_in)
    out_off = _irreps_offsets(irreps_out)

    # Every input irrep connects to every output irrep with the same (l, parity).
    instructions = []
    for i, (_mul_i, (l_i, p_i)) in enumerate(irreps_in):
        for j, (_mul_j, (l_j, p_j)) in enumerate(irreps_out):
            if (l_i, p_i) == (l_j, p_j):
                instructions.append((i, j))

    # e3nn 'element' normalization: alpha_j = sum of input multiplicities over
    # all paths feeding output j (NOT mul_i * num_paths).
    alpha_into = {}
    for (i, j) in instructions:
        alpha_into[j] = alpha_into.get(j, 0) + irreps_in[i][0]

    w_dense = jnp.zeros((d_in, d_out), dtype=jnp.float32)
    raw_weights = []
    keys = jax.random.split(key, max(len(instructions), 1))
    for k, (i, j) in zip(keys, instructions):
        mul_i, (l, _p) = irreps_in[i]
        mul_j, _ = irreps_out[j]
        w = jax.random.normal(k, (mul_i, mul_j), dtype=jnp.float32)  # e3nn init ~ N(0,1)
        raw_weights.append(w)
        alpha = float(alpha_into[j])
        path_weight = alpha ** -0.5 if alpha > 0 else 1.0
        block = jnp.kron(w, jnp.eye(2 * l + 1, dtype=jnp.float32)) * path_weight
        w_dense = w_dense.at[in_off[i]:in_off[i + 1],
                             out_off[j]:out_off[j + 1]].add(block)

    return (w_dense.astype(dtype), raw_weights, instructions,
            in_off, out_off, alpha_into)


# ----------------------------- Pallas kernel ----------------------------------


def _linear_kernel(x_ref, w_ref, out_ref):
    # x_ref: [tb, d_in], w_ref: [d_in, d_out], out_ref: [tb, d_out]
    x = x_ref[...]
    w = w_ref[...]
    if x.dtype != w.dtype:
        # bf16 MXU-operand path: cast the resident VMEM tile only (no extra
        # HBM pass added in the wrapper); accumulation stays f32 below.
        x = x.astype(w.dtype)
    out_ref[...] = jnp.dot(x, w, preferred_element_type=jnp.float32
                           ).astype(out_ref.dtype)


def _equivariant_linear_pallas(x, w, *, tb_max=1024, out_dtype=None):
    """x: [B, d_in] flat irreps features; w: [d_in, d_out] dense equivalent of
    the o3.Linear (kron/path-norm structure baked in).  Returns [B, d_out]."""
    B, d_in = x.shape
    d_in_w, d_out = w.shape
    assert d_in == d_in_w, (d_in, d_in_w)
    if out_dtype is None:
        out_dtype = x.dtype

    itemsz = lambda dt: jnp.dtype(dt).itemsize
    sublane = 16 if itemsz(w.dtype) == 2 else 8   # bf16 packs 2 rows / sublane

    # Batch tiling: no padding of x (Pallas masks out-of-bounds edge blocks);
    # force >= 2 grid steps once B is large enough so that v7x's two
    # TensorCores both get work and the pipeline overlaps in/out DMA.
    min_steps = 2 if B > 512 else 1
    n_steps = max(pl.cdiv(B, tb_max), min_steps)
    if n_steps == 1:
        tb = B                                     # block dim == full array dim
    else:
        tb = _round_up(pl.cdiv(B, n_steps), sublane)
    grid_b = pl.cdiv(B, tb)

    flops = 2 * B * d_in * d_out
    bytes_accessed = (B * d_in * itemsz(x.dtype)
                      + d_in * d_out * itemsz(w.dtype)
                      + B * d_out * itemsz(out_dtype))
    cost = pl.CostEstimate(flops=flops, transcendentals=0,
                           bytes_accessed=bytes_accessed)

    # Working set: double-buffered x / out tiles + single-buffered weight.
    ws = (2 * tb * d_in * itemsz(x.dtype)
          + 2 * tb * d_out * itemsz(out_dtype)
          + d_in * d_out * itemsz(w.dtype))
    compiler_kwargs = dict(dimension_semantics=("parallel",))
    if ws > (12 << 20):
        # Only raise the scoped-VMEM limit when the working set needs it
        # (v5e default ~16 MiB); cap below v7x physical VMEM (64 MiB).
        compiler_kwargs["vmem_limit_bytes"] = int(min(2 * ws + (4 << 20), 64 << 20))

    return pl.pallas_call(
        _linear_kernel,
        out_shape=jax.ShapeDtypeStruct((B, d_out), out_dtype),
        grid_spec=pltpu.PrefetchScalarGridSpec(
            num_scalar_prefetch=0,
            grid=(grid_b,),
            in_specs=[
                # x: feature dim kept at its true size (== full array dim).
                pl.BlockSpec((tb, d_in), lambda i: (i, 0)),
                # Weight: constant block index -> fetched once and resident;
                # single-buffered to halve its VMEM footprint.
                pl.BlockSpec((d_in, d_out), lambda i: (0, 0),
                             pipeline_mode=pl.Buffered(buffer_count=1)),
            ],
            # Output written at its true width d_out (no 128-lane padding, no
            # post-kernel slice pass).
            out_specs=pl.BlockSpec((tb, d_out), lambda i: (i, 0)),
        ),
        compiler_params=pltpu.CompilerParams(**compiler_kwargs),
        cost_estimate=cost,
    )(x, w)


# ----------------------------- module wrapper ---------------------------------


class LinearDipoleReadoutBlockPallas:
    """Pallas-TPU forward of MACE LinearDipoleReadoutBlock (o3.Linear readout).

    operand_dtype controls the dtype the dense weight is stored in (and hence
    the MXU operand dtype): float32 by default; jnp.bfloat16 halves weight /
    operand traffic on v6e/v7x (x tiles are cast in VMEM inside the kernel, the
    accumulation stays float32 and the output keeps x's dtype).
    """

    def __init__(self, irreps_in, n_energies, compute_nacs, key,
                 operand_dtype=jnp.float32, tb_max=1024):
        if compute_nacs:
            n_vec = n_energies + n_energies * (n_energies - 1)
        else:
            n_vec = n_energies + (n_energies * (n_energies - 1)) // 2
        self.irreps_in = list(irreps_in)
        self.irreps_out = [(int(n_energies), (0, 1)), (int(n_vec), (1, -1))]
        self.dim_in = _irreps_dim(self.irreps_in)
        self.dim_out = _irreps_dim(self.irreps_out)
        self.tb_max = tb_max

        (self.w_dense, self.raw_weights, self.instructions,
         self.in_off, self.out_off, self.alpha_into) = _make_o3_linear_dense_weight(
            key, self.irreps_in, self.irreps_out, dtype=operand_dtype)

    def __call__(self, x):
        return _equivariant_linear_pallas(x, self.w_dense, tb_max=self.tb_max,
                                          out_dtype=x.dtype)

    def reference(self, x):
        """Pure-JAX e3nn-style reference (per-path einsum, weight shared across
        m-components, 'element' path normalization) in float32."""
        B = x.shape[0]
        x32 = x.astype(jnp.float32)
        out = jnp.zeros((B, self.dim_out), jnp.float32)
        for w, (i, j) in zip(self.raw_weights, self.instructions):
            mul_i, (l, _p) = self.irreps_in[i]
            mul_j, _ = self.irreps_out[j]
            xi = x32[:, self.in_off[i]:self.in_off[i + 1]].reshape(B, mul_i, 2 * l + 1)
            alpha = float(self.alpha_into[j])
            scale = alpha ** -0.5 if alpha > 0 else 1.0
            yj = jnp.einsum('bcm,ck->bkm', xi, w) * scale
            out = out.at[:, self.out_off[j]:self.out_off[j + 1]].add(
                yj.reshape(B, mul_j * (2 * l + 1)))
        return out


# ----------------------------- demo / check -----------------------------------


if __name__ == "__main__":
    key = jax.random.PRNGKey(0)
    k_w, k_x = jax.random.split(key)

    # Small MACE-style hidden irreps feeding the readout: "8x0e + 8x1o" -> dim_in = 32
    irreps_in = [(8, (0, 1)), (8, (1, -1))]
    n_energies = 2
    compute_nacs = False   # -> irreps_out = 2x0e + 3x1o, dim_out = 11

    B = 64
    x = jax.random.normal(k_x, (B, _irreps_dim(irreps_in)), jnp.float32)

    # f32 path (reference-accuracy check).
    block = LinearDipoleReadoutBlockPallas(irreps_in, n_energies, compute_nacs, k_w)
    out = jax.block_until_ready(block(x))
    ref = block.reference(x)
    assert out.shape == (B, block.dim_out)
    assert jnp.allclose(out, ref, atol=1e-4, rtol=1e-4), "f32 mismatch vs o3.Linear reference"

    # bf16 MXU-operand path (v6e/v7x traffic optimization), f32 accumulation.
    block_bf16 = LinearDipoleReadoutBlockPallas(irreps_in, n_energies, compute_nacs,
                                                k_w, operand_dtype=jnp.bfloat16)
    out_bf16 = jax.block_until_ready(block_bf16(x))
    assert out_bf16.shape == (B, block.dim_out)
    assert jnp.allclose(out_bf16, ref, atol=5e-2, rtol=5e-2), "bf16 path mismatch"

    print("KERNEL_OK")
</pallas_src>

<mosaic_0001>
module attributes {stable_mosaic.version = 11 : i64} {
  func.func @_linear_kernel(%arg0: i32, %arg1: memref<64x32xf32, #tpu.memory_space<vmem>>, %arg2: memref<32x11xf32, #tpu.memory_space<vmem>>, %arg3: memref<64x11xf32, #tpu.memory_space<vmem>>) attributes {dimension_semantics = [#tpu.dimension_semantics<parallel>], iteration_bounds = array<i64: 1>, scalar_prefetch = 0 : i64, scratch_operands = 0 : i64, tpu.core_type = #tpu.core_type<tc>, window_params = [{transform_indices = @transform_0, window_bounds = array<i64: 64, 32>}, {pipeline_mode = #tpu.pipeline_mode<synchronous>, transform_indices = @transform_1, window_bounds = array<i64: 32, 11>}, {transform_indices = @transform_2, window_bounds = array<i64: 64, 11>}]} {
    %c0 = arith.constant 0 : index
    %c0_0 = arith.constant 0 : index
    %0 = vector.load %arg1[%c0, %c0_0] : memref<64x32xf32, #tpu.memory_space<vmem>>, vector<64x32xf32>
    %c0_1 = arith.constant 0 : index
    %c0_2 = arith.constant 0 : index
    %1 = vector.load %arg2[%c0_1, %c0_2] : memref<32x11xf32, #tpu.memory_space<vmem>>, vector<32x11xf32>
    %cst = arith.constant dense<0.000000e+00> : vector<64x11xf32>
    %2 = tpu.matmul %0, %1, %cst {dimension_numbers = #tpu.dot_dimension_numbers<[1], [0], [0], [1], [0, 0, 1, 1], [], []>} : vector<64x32xf32>, vector<32x11xf32>, vector<64x11xf32> -> vector<64x11xf32>
    %c0_3 = arith.constant 0 : index
    %c0_4 = arith.constant 0 : index
    %3 = vector.load %arg3[%c0_3, %c0_4] : memref<64x11xf32, #tpu.memory_space<vmem>>, vector<64x11xf32>
    tpu.vector_store %arg3[%c0_3, %c0_4], %2 {strides = array<i32>} : memref<64x11xf32, #tpu.memory_space<vmem>>, vector<64x11xf32>,
    return
  }
  func.func @transform_0(%arg0: i32) -> (i32, i32) {
    %c0_i32 = arith.constant 0 : i32
    %c0_i32_0 = arith.constant 0 : i32
    return %arg0, %c0_i32 : i32, i32
  }
  func.func @transform_1(%arg0: i32) -> (i32, i32) {
    %c0_i32 = arith.constant 0 : i32
    %c0_i32_0 = arith.constant 0 : i32
    %c0_i32_1 = arith.constant 0 : i32
    return %c0_i32, %c0_i32_0 : i32, i32
  }
  func.func @transform_2(%arg0: i32) -> (i32, i32) {
    %c0_i32 = arith.constant 0 : i32
    %c0_i32_0 = arith.constant 0 : i32
    return %arg0, %c0_i32 : i32, i32
  }
}

</mosaic_0001>

<llo_original>
// kernel: tpu_custom_call.1
$region0: #{tpu_custom_call.1}
  #allocation0 [shape = 'u32[]', space=smem, size = 0x4, offset = 0x4, fixed_abs, tag = 'smem constant byte address 0x4 - core index']
  #allocation1 [shape = 'u32[144,128]{1,0:T(1,128)}', space=vmem, size = 0x12000, scoped, tag = 'internal scratch']
  %s0 = inlined_call_operand.vmem [shape: f32[64,32], index: 0, kind: input, shape index: {}]
  %s1 = inlined_call_operand.vmem [shape: f32[32,11], index: 1, kind: input, shape index: {}]
  %s2 = inlined_call_operand.vmem [shape: f32[64,11], index: 2, kind: output, shape index: {}]
  %s3 = sld [smem:[#allocation0]]
  $region18: #{tpu_custom_call.1} parent=0
    _
  %s5 = ssub.s32 1, %s3
  %s6 = scalar_select 0, %s5, %s3
  // Predicated region
  $region2: #{tpu_custom_call.1} parent=0 // pred_check
    _
  $region3: #{tpu_custom_call.1} parent=0 // pred_check_branch
    %8 = sbr.rel (0) target = $region5
  $region4: #{tpu_custom_call.1} parent=0 // pred_region
    _
  $region5: #{tpu_custom_call.1} parent=0 // pred_fallthru
    _
  // Predicated region
  $region6: #{tpu_custom_call.1} parent=0 // pred_check
    _
  $region7: #{tpu_custom_call.1} parent=0 // pred_check_branch
    %10 = sbr.rel (0) target = $region9
  $region8: #{tpu_custom_call.1} parent=0 // pred_region
    _
  $region9: #{tpu_custom_call.1} parent=0 // pred_fallthru
    _
  %v11 = vld [vmem:[%s0] sm:$0xff]
  %v12 = vld [vmem:[%s0 + $0x8] sm:$0xff]
  %v13 = vld [vmem:[%s0 + $0x10] sm:$0xff]
  %v14 = vld [vmem:[%s0 + $0x18] sm:$0xff]
  %v15 = vld [vmem:[%s0 + $0x20] sm:$0xff]
  %v16 = vld [vmem:[%s0 + $0x28] sm:$0xff]
  %v17 = vld [vmem:[%s0 + $0x30] sm:$0xff]
  %v18 = vld [vmem:[%s0 + $0x38] sm:$0xff]
  %v19 = vld [vmem:[%s1] sm:$0xff]
  %v20 = vld [vmem:[%s1 + $0x8] sm:$0xff]
  %v21 = vld [vmem:[%s1 + $0x10] sm:$0xff]
  %v22 = vld [vmem:[%s1 + $0x18] sm:$0xff]
  %vm23 = vcmask 261120
  %v25 = vsel %vm23, %v11, 0
  %v28 = vsel %vm23, %v12, 0
  %v31 = vsel %vm23, %v13, 0
  %v34 = vsel %vm23, %v14, 0
  %v37 = vsel %vm23, %v15, 0
  %v40 = vsel %vm23, %v16, 0
  %v43 = vsel %vm23, %v17, 0
  %v46 = vsel %vm23, %v18, 0
  %48 = vmatprep.subr.mxu0 0.0
  %49 = vmatpush1.msra.mxu0 %v19
  %50 = vmatprep.subr.mxu0 0.0
  %51 = vmatpush1.msra.mxu0 %v20
  %52 = vmatprep.subr.mxu0 0.0
  %53 = vmatpush1.msra.mxu0 %v21
  %54 = vmatprep.subr.mxu0 0.0
  %55 = vmatpush1.msra.mxu0 %v22
  %56 = vmatprep.subr.mxu0 0.0
  %57 = vmatpush1.msra.mxu0 0.0
  %58 = vmatprep.subr.mxu0 0.0
  %59 = vmatpush1.msra.mxu0 0.0
  %60 = vmatprep.subr.mxu0 0.0
  %61 = vmatpush1.msra.mxu0 0.0
  %62 = vmatprep.subr.mxu0 0.0
  %63 = vmatpush1.msra.mxu0 0.0
  %64 = vmatprep.subr.mxu0 0.0
  %65 = vmatpush1.msra.mxu0 0.0
  %66 = vmatprep.subr.mxu0 0.0
  %67 = vmatpush1.msra.mxu0 0.0
  %68 = vmatprep.subr.mxu0 0.0
  %69 = vmatpush1.msra.mxu0 0.0
  %70 = vmatprep.subr.mxu0 0.0
  %71 = vmatpush1.msra.mxu0 0.0
  %72 = vmatprep.subr.mxu0 0.0
  %73 = vmatpush1.msra.mxu0 0.0
  %74 = vmatprep.subr.mxu0 0.0
  %75 = vmatpush1.msra.mxu0 0.0
  %76 = vmatprep.subr.mxu0 0.0
  %77 = vmatpush1.msra.mxu0 0.0
  %78 = vmatprep.subr.mxu0 0.0
  %79 = vmatpush1.msra.mxu0 0.0
  %80 = vmatprep.subr.mxu0 0.0
  %81 = vmatpush1.msra.mxu0 0.0
  %82 = vmatprep.subr.mxu0 0.0
  %83 = vmatpush1.msra.mxu0 0.0
  %84 = vmatprep.subr.mxu0 0.0
  %85 = vmatpush1.msra.mxu0 0.0
  %86 = vmatprep.subr.mxu0 0.0
  %87 = vmatpush1.msra.mxu0 0.0
  %88 = vmatprep.subr.mxu0 0.0
  %89 = vmatpush1.msra.mxu0 0.0
  %90 = vmatprep.subr.mxu0 0.0
  %91 = vmatpush1.msra.mxu0 0.0
  %92 = vmatprep.subr.mxu0 0.0
  %93 = vmatpush1.msra.mxu0 0.0
  %94 = vmatprep.subr.mxu0 0.0
  %95 = vmatpush1.msra.mxu0 0.0
  %96 = vmatprep.subr.mxu0 0.0
  %97 = vmatpush1.msra.mxu0 0.0
  %98 = vmatprep.subr.mxu0 0.0
  %99 = vmatpush1.msra.mxu0 0.0
  %100 = vmatprep.subr.mxu0 0.0
  %101 = vmatpush1.msra.mxu0 0.0
  %102 = vmatprep.subr.mxu0 0.0
  %103 = vmatpush1.msra.mxu0 0.0
  %104 = vmatprep.subr.mxu0 0.0
  %105 = vmatpush1.msra.mxu0 0.0
  %106 = vmatprep.subr.mxu0 0.0
  %107 = vmatpush1.msra.mxu0 0.0
  %108 = vmatprep.subr.mxu0 0.0
  %109 = vmatpush1.msra.mxu0 0.0
  %110 = vmatprep.subr.mxu0 0.0
  %111 = vmatpush1.msra.mxu0 0.0
  %112 = vmatprep.mubr.f32.mxu0 0.0
  %113 = vmatmul.mubr.f32.gmra.mrb[0].mxu0 %v25
  %v114 = vpop.f32.mrb[0].mxu0
  %v115 = vadd.f32 0.0, %v114
  %v116 = vpop.f32.mrb[0].mxu0
  %117 = vmatprep.mubr.f32.mxu0 0.0
  %118 = vmatmul.mubr.f32.gmra.mrb[0].mxu0 %v28
  %v119 = vpop.f32.mrb[0].mxu0
  %v120 = vadd.f32 0.0, %v119
  %v121 = vpop.f32.mrb[0].mxu0
  %122 = vmatprep.mubr.f32.mxu0 0.0
  %123 = vmatmul.mubr.f32.gmra.mrb[0].mxu0 %v31
  %v124 = vpop.f32.mrb[0].mxu0
  %v125 = vadd.f32 0.0, %v124
  %v126 = vpop.f32.mrb[0].mxu0
  %127 = vmatprep.mubr.f32.mxu0 0.0
  %128 = vmatmul.mubr.f32.gmra.mrb[0].mxu0 %v34
  %v129 = vpop.f32.mrb[0].mxu0
  %v130 = vadd.f32 0.0, %v129
  %v131 = vpop.f32.mrb[0].mxu0
  %132 = vmatprep.mubr.f32.mxu0 0.0
  %133 = vmatmul.mubr.f32.gmra.mrb[0].mxu0 %v37
  %v134 = vpop.f32.mrb[0].mxu0
  %v135 = vadd.f32 0.0, %v134
  %v136 = vpop.f32.mrb[0].mxu0
  %137 = vmatprep.mubr.f32.mxu0 0.0
  %138 = vmatmul.mubr.f32.gmra.mrb[0].mxu0 %v40
  %v139 = vpop.f32.mrb[0].mxu0
  %v140 = vadd.f32 0.0, %v139
  %v141 = vpop.f32.mrb[0].mxu0
  %142 = vmatprep.mubr.f32.mxu0 0.0
  %143 = vmatmul.mubr.f32.gmra.mrb[0].mxu0 %v43
  %v144 = vpop.f32.mrb[0].mxu0
  %v145 = vadd.f32 0.0, %v144
  %v146 = vpop.f32.mrb[0].mxu0
  %147 = vmatprep.mubr.f32.mxu0 0.0
  %148 = vmatmul.mubr.f32.gmra.mrb[0].mxu0 %v46
  %v149 = vpop.f32.mrb[0].mxu0
  %v150 = vadd.f32 0.0, %v149
  %v151 = vpop.f32.mrb[0].mxu0
  %152 = vdwg.mxu0
  %vm153 = vcmask 89088
  %154 = vst.msk [vmem:[%s2] sm:$0xff] %vm153, %v115
  %155 = vst.msk [vmem:[%s2 + $0x8] sm:$0xff] %vm153, %v120
  %156 = vst.msk [vmem:[%s2 + $0x10] sm:$0xff] %vm153, %v125
  %157 = vst.msk [vmem:[%s2 + $0x18] sm:$0xff] %vm153, %v130
  %158 = vst.msk [vmem:[%s2 + $0x20] sm:$0xff] %vm153, %v135
  %159 = vst.msk [vmem:[%s2 + $0x28] sm:$0xff] %vm153, %v140
  %160 = vst.msk [vmem:[%s2 + $0x30] sm:$0xff] %vm153, %v145
  %161 = vst.msk [vmem:[%s2 + $0x38] sm:$0xff] %vm153, %v150
  // Predicated region
  $region10: #{tpu_custom_call.1} parent=0 // pred_check
    _
  $region11: #{tpu_custom_call.1} parent=0 // pred_check_branch
    %163 = sbr.rel (0) target = $region13
  $region12: #{tpu_custom_call.1} parent=0 // pred_region
    _
  $region13: #{tpu_custom_call.1} parent=0 // pred_fallthru
    _
  // Predicated region
  $region14: #{tpu_custom_call.1} parent=0 // pred_check
    _
  $region15: #{tpu_custom_call.1} parent=0 // pred_check_branch
    %165 = sbr.rel (0) target = $region17
  $region16: #{tpu_custom_call.1} parent=0 // pred_region
    _
  $region17: #{tpu_custom_call.1} parent=0 // pred_fallthru
    _

</llo_original>
